<compile_context>
chip_gen: v6e
topology: v6e:2x2x1
jax: 0.10.0
libtpu: 0.0.40
codegen_flags: <defaults>
</compile_context>

<pallas_src>
import functools

import jax
import jax.numpy as jnp
from jax.experimental import pallas as pl
from jax.experimental.pallas import tpu as pltpu

IN_DIM = 512
HID_DIM = 100
HID_PAD = 128          # each head's hidden block padded to one lane register
OUT_PAD = 128          # packed output lanes (all heads share one 128-lane tile)
TB_MAX = 1024          # batch tile (rows) once the batch gets large

# Packed output column ranges (disjoint per head).
CLASS_COLS = (0, 2)
DOMAIN_COLS = (2, 9)
DOMAINX_COLS = (9, 16)


def _fused_mlp_kernel(x_ref, w1_ref, b1_ref, w2_ref, b2_ref, o_ref):
    # x:  (TB, 512)  (caller dtype; cast to bf16 here for the MXU)
    # w1: (512, H1)  bf16      b1: (1, H1)  f32
    # w2: (H1, 128)  bf16      b2: (1, 128) f32
    # o:  (TB, 128)  f32
    x = x_ref[...].astype(jnp.bfloat16)
    h = jnp.dot(x, w1_ref[...], preferred_element_type=jnp.float32)
    h = jnp.maximum(h + b1_ref[...], 0.0)                 # bias + ReLU on the VPU
    o = jnp.dot(h.astype(jnp.bfloat16), w2_ref[...],
                preferred_element_type=jnp.float32)
    o_ref[...] = o + b2_ref[...]


def _fused_mlp(x, w1, b1, w2, b2):
    """One pallas_call running the packed MLP over the whole batch.

    x: (B, 512); w1: (512, H1) bf16; b1: (1, H1) f32;
    w2: (H1, 128) bf16; b2: (1, 128) f32.
    Returns (B, 128) float32 packed logits.
    """
    B = x.shape[0]
    H1 = w1.shape[1]
    tb = B if B <= TB_MAX else TB_MAX
    nb = pl.cdiv(B, tb)

    return pl.pallas_call(
        _fused_mlp_kernel,
        out_shape=jax.ShapeDtypeStruct((B, OUT_PAD), jnp.float32),
        grid=(nb,),
        in_specs=[
            pl.BlockSpec((tb, IN_DIM), lambda b: (b, 0)),
            # Constant block index across the batch-tile axis -> packed weights
            # and biases are DMA'd once and stay resident in VMEM.
            pl.BlockSpec((IN_DIM, H1), lambda b: (0, 0)),
            pl.BlockSpec((1, H1), lambda b: (0, 0)),
            pl.BlockSpec((H1, OUT_PAD), lambda b: (0, 0)),
            pl.BlockSpec((1, OUT_PAD), lambda b: (0, 0)),
        ],
        out_specs=pl.BlockSpec((tb, OUT_PAD), lambda b: (b, 0)),
        compiler_params=pltpu.CompilerParams(
            # Single batch-tile axis, fully independent -> shards evenly across
            # v7x's two TensorCores; neutral on v5e/v6e.
            dimension_semantics=("parallel",)),
    )(x, w1, b1, w2, b2)


def init_params(key):
    """PyTorch-like Linear init + one-time packing of the fused head weights."""

    def linear(key, fan_in, fan_out):
        kw, kb = jax.random.split(key)
        bound = 1.0 / jnp.sqrt(fan_in)
        w = jax.random.uniform(kw, (fan_in, fan_out), jnp.float32, -bound, bound)
        b = jax.random.uniform(kb, (fan_out,), jnp.float32, -bound, bound)
        return w, b

    keys = jax.random.split(key, 8)
    raw = {
        "class": {"fc1": linear(keys[0], IN_DIM, HID_DIM),
                  "fc3": linear(keys[1], HID_DIM, 2)},
        "domain": {"fc1": linear(keys[2], IN_DIM, HID_DIM),
                   "fc2": linear(keys[3], HID_DIM, 7)},
        "domain_0": {"fc1": linear(keys[4], IN_DIM, HID_DIM),
                     "fc2": linear(keys[5], HID_DIM, 7)},
        "domain_1": {"fc1": linear(keys[6], IN_DIM, HID_DIM),
                     "fc2": linear(keys[7], HID_DIM, 7)},
    }

    def pack_heads(head_list, col_ranges):
        """head_list: [(w1, b1, w2, b2), ...]; col_ranges: [(c0, c1), ...]."""
        n = len(head_list)
        H1 = n * HID_PAD
        W1 = jnp.zeros((IN_DIM, H1), jnp.float32)
        B1 = jnp.zeros((1, H1), jnp.float32)
        W2 = jnp.zeros((H1, OUT_PAD), jnp.float32)
        B2 = jnp.zeros((1, OUT_PAD), jnp.float32)
        for i, ((w1, b1, w2, b2), (c0, c1)) in enumerate(zip(head_list, col_ranges)):
            r0 = i * HID_PAD
            W1 = W1.at[:, r0:r0 + HID_DIM].set(w1)
            B1 = B1.at[0, r0:r0 + HID_DIM].set(b1)
            W2 = W2.at[r0:r0 + HID_DIM, c0:c1].set(w2)
            B2 = B2.at[0, c0:c1].set(b2)
        # Zero padding in weights/biases keeps the real output columns
        # bit-equivalent to the unpadded per-head matmuls (up to bf16 rounding).
        return (W1.astype(jnp.bfloat16), B1,
                W2.astype(jnp.bfloat16), B2)

    def head(name, fc2_key):
        w1, b1 = raw[name]["fc1"]
        w2, b2 = raw[name][fc2_key]
        return (w1, b1, w2, b2)

    train_cols = [CLASS_COLS, DOMAIN_COLS, DOMAINX_COLS]
    return {
        "raw": raw,   # original (unpadded) f32 weights, for reference checks
        "train_true": pack_heads(
            [head("class", "fc3"), head("domain", "fc2"), head("domain_1", "fc2")],
            train_cols),
        "train_false": pack_heads(
            [head("class", "fc3"), head("domain", "fc2"), head("domain_0", "fc2")],
            train_cols),
        "eval": pack_heads([head("class", "fc3")], [CLASS_COLS]),
    }


@functools.partial(jax.jit, static_argnames=("phase", "class_out"))
def cnn_model_forward(params, input_data, alpha, phase, class_out):
    """Mirrors CNNModel.forward. input_data: any shape with 512 features/row."""
    del alpha  # ReverseLayerF forward == identity (alpha only scales gradients)
    x = input_data.reshape(-1, IN_DIM)

    if phase == "train":
        bundle = params["train_true"] if class_out else params["train_false"]
        out = _fused_mlp(x, *bundle)                       # (B, 128) packed
        class_output = out[:, CLASS_COLS[0]:CLASS_COLS[1]]
        domain_output = out[:, DOMAIN_COLS[0]:DOMAIN_COLS[1]]
        domain_output_class = out[:, DOMAINX_COLS[0]:DOMAINX_COLS[1]]
        return class_output, domain_output, domain_output_class

    # eval path: class classifier only (smaller packed bundle, H1 = 128)
    out = _fused_mlp(x, *params["eval"])                   # (B, 128) packed
    return out[:, CLASS_COLS[0]:CLASS_COLS[1]]


def _reference_mlp(x, w1, b1, w2, b2):
    h = jnp.maximum(x @ w1 + b1, 0.0)
    return h @ w2 + b2


if __name__ == "__main__":
    key = jax.random.PRNGKey(0)
    kparam, kdata = jax.random.split(key)

    params = init_params(kparam)

    B = 8
    # Simulate the (B, 512, 1, 1) feature map that the module's view(-1, 512) expects.
    x = jax.random.normal(kdata, (B, IN_DIM, 1, 1), dtype=jnp.float32)
    alpha = 0.3

    # train, class_out=True path
    c_out, d_out, d_out_cls1 = cnn_model_forward(params, x, alpha, "train", True)
    jax.block_until_ready((c_out, d_out, d_out_cls1))
    assert c_out.shape == (B, 2)
    assert d_out.shape == (B, 7)
    assert d_out_cls1.shape == (B, 7)

    # train, class_out=False path
    c_out2, d_out2, d_out_cls0 = cnn_model_forward(params, x, alpha, "train", False)
    jax.block_until_ready((c_out2, d_out2, d_out_cls0))
    assert d_out_cls0.shape == (B, 7)

    # eval path
    c_eval = cnn_model_forward(params, x, alpha, "test", False)
    jax.block_until_ready(c_eval)
    assert c_eval.shape == (B, 2)

    # Correctness check against pure-JAX f32 reference on the original weights.
    # Tolerance relaxed for bf16 MXU operands (f32 accumulation).
    xf = x.reshape(-1, IN_DIM)
    raw = params["raw"]
    ref_c = _reference_mlp(xf, *raw["class"]["fc1"], *raw["class"]["fc3"])
    ref_d = _reference_mlp(xf, *raw["domain"]["fc1"], *raw["domain"]["fc2"])
    ref_d1 = _reference_mlp(xf, *raw["domain_1"]["fc1"], *raw["domain_1"]["fc2"])
    ref_d0 = _reference_mlp(xf, *raw["domain_0"]["fc1"], *raw["domain_0"]["fc2"])
    tol = dict(atol=3e-2, rtol=3e-2)
    assert jnp.allclose(c_out, ref_c, **tol)
    assert jnp.allclose(d_out, ref_d, **tol)
    assert jnp.allclose(d_out_cls1, ref_d1, **tol)
    assert jnp.allclose(c_out2, ref_c, **tol)
    assert jnp.allclose(d_out2, ref_d, **tol)
    assert jnp.allclose(d_out_cls0, ref_d0, **tol)
    assert jnp.allclose(c_eval, ref_c, **tol)

    print("KERNEL_OK")
</pallas_src>

<mosaic_0001>
module attributes {stable_mosaic.version = 11 : i64} {
  func.func @_fused_mlp_kernel(%arg0: i32, %arg1: memref<8x512xf32, #tpu.memory_space<vmem>>, %arg2: memref<512x384xbf16, #tpu.memory_space<vmem>>, %arg3: memref<1x384xf32, #tpu.memory_space<vmem>>, %arg4: memref<384x128xbf16, #tpu.memory_space<vmem>>, %arg5: memref<1x128xf32, #tpu.memory_space<vmem>>, %arg6: memref<8x128xf32, #tpu.memory_space<vmem>>) attributes {dimension_semantics = [#tpu.dimension_semantics<parallel>], iteration_bounds = array<i64: 1>, scalar_prefetch = 0 : i64, scratch_operands = 0 : i64, tpu.core_type = #tpu.core_type<tc>, window_params = [{transform_indices = @transform_0, window_bounds = array<i64: 8, 512>}, {pipeline_mode = #tpu.pipeline_mode<synchronous>, transform_indices = @transform_1, window_bounds = array<i64: 512, 384>}, {pipeline_mode = #tpu.pipeline_mode<synchronous>, transform_indices = @transform_2, window_bounds = array<i64: 1, 384>}, {pipeline_mode = #tpu.pipeline_mode<synchronous>, transform_indices = @transform_3, window_bounds = array<i64: 384, 128>}, {pipeline_mode = #tpu.pipeline_mode<synchronous>, transform_indices = @transform_4, window_bounds = array<i64: 1, 128>}, {transform_indices = @transform_5, window_bounds = array<i64: 8, 128>}]} {
    %c0 = arith.constant 0 : index
    %c0_0 = arith.constant 0 : index
    %0 = vector.load %arg1[%c0, %c0_0] : memref<8x512xf32, #tpu.memory_space<vmem>>, vector<8x512xf32>
    %1 = arith.truncf %0 : vector<8x512xf32> to vector<8x512xbf16>
    %c0_1 = arith.constant 0 : index
    %c0_2 = arith.constant 0 : index
    %2 = vector.load %arg2[%c0_1, %c0_2] : memref<512x384xbf16, #tpu.memory_space<vmem>>, vector<512x384xbf16>
    %cst = arith.constant dense<0.000000e+00> : vector<8x384xf32>
    %3 = tpu.matmul %1, %2, %cst {dimension_numbers = #tpu.dot_dimension_numbers<[1], [0], [0], [1], [0, 0, 1, 1], [], []>} : vector<8x512xbf16>, vector<512x384xbf16>, vector<8x384xf32> -> vector<8x384xf32>
    %c0_3 = arith.constant 0 : index
    %c0_4 = arith.constant 0 : index
    %4 = vector.load %arg3[%c0_3, %c0_4] : memref<1x384xf32, #tpu.memory_space<vmem>>, vector<1x384xf32>
    %5 = vector.broadcast %4 : vector<1x384xf32> to vector<8x384xf32>
    %6 = arith.addf %3, %5 : vector<8x384xf32>
    %cst_5 = arith.constant 0.000000e+00 : f32
    %7 = vector.broadcast %cst_5 : f32 to vector<8x384xf32>
    %8 = arith.maximumf %6, %7 : vector<8x384xf32>
    %9 = arith.truncf %8 : vector<8x384xf32> to vector<8x384xbf16>
    %c0_6 = arith.constant 0 : index
    %c0_7 = arith.constant 0 : index
    %10 = vector.load %arg4[%c0_6, %c0_7] : memref<384x128xbf16, #tpu.memory_space<vmem>>, vector<384x128xbf16>
    %cst_8 = arith.constant dense<0.000000e+00> : vector<8x128xf32>
    %11 = tpu.matmul %9, %10, %cst_8 {dimension_numbers = #tpu.dot_dimension_numbers<[1], [0], [0], [1], [0, 0, 1, 1], [], []>} : vector<8x384xbf16>, vector<384x128xbf16>, vector<8x128xf32> -> vector<8x128xf32>
    %c0_9 = arith.constant 0 : index
    %c0_10 = arith.constant 0 : index
    %12 = vector.load %arg5[%c0_9, %c0_10] : memref<1x128xf32, #tpu.memory_space<vmem>>, vector<1x128xf32>
    %13 = vector.broadcast %12 : vector<1x128xf32> to vector<8x128xf32>
    %14 = arith.addf %11, %13 : vector<8x128xf32>
    %c0_11 = arith.constant 0 : index
    %c0_12 = arith.constant 0 : index
    %15 = vector.load %arg6[%c0_11, %c0_12] : memref<8x128xf32, #tpu.memory_space<vmem>>, vector<8x128xf32>
    tpu.vector_store %arg6[%c0_11, %c0_12], %14 {strides = array<i32>} : memref<8x128xf32, #tpu.memory_space<vmem>>, vector<8x128xf32>,
    return
  }
  func.func @transform_0(%arg0: i32) -> (i32, i32) {
    %c0_i32 = arith.constant 0 : i32
    %c0_i32_0 = arith.constant 0 : i32
    return %arg0, %c0_i32 : i32, i32
  }
  func.func @transform_1(%arg0: i32) -> (i32, i32) {
    %c0_i32 = arith.constant 0 : i32
    %c0_i32_0 = arith.constant 0 : i32
    %c0_i32_1 = arith.constant 0 : i32
    return %c0_i32, %c0_i32_0 : i32, i32
  }
  func.func @transform_2(%arg0: i32) -> (i32, i32) {
    %c0_i32 = arith.constant 0 : i32
    %c0_i32_0 = arith.constant 0 : i32
    %c0_i32_1 = arith.constant 0 : i32
    return %c0_i32, %c0_i32_0 : i32, i32
  }
  func.func @transform_3(%arg0: i32) -> (i32, i32) {
    %c0_i32 = arith.constant 0 : i32
    %c0_i32_0 = arith.constant 0 : i32
    %c0_i32_1 = arith.constant 0 : i32
    return %c0_i32, %c0_i32_0 : i32, i32
  }
  func.func @transform_4(%arg0: i32) -> (i32, i32) {
    %c0_i32 = arith.constant 0 : i32
    %c0_i32_0 = arith.constant 0 : i32
    %c0_i32_1 = arith.constant 0 : i32
    return %c0_i32, %c0_i32_0 : i32, i32
  }
  func.func @transform_5(%arg0: i32) -> (i32, i32) {
    %c0_i32 = arith.constant 0 : i32
    %c0_i32_0 = arith.constant 0 : i32
    return %arg0, %c0_i32 : i32, i32
  }
}

</mosaic_0001>

<llo_original>
// kernel: cnn_model_forward.1
$region0: #{cnn_model_forward.1}
  #allocation0 [shape = 'u32[]', space=smem, size = 0x4, offset = 0x4, fixed_abs, tag = 'smem constant byte address 0x4 - core index']
  #allocation1 [shape = 'u32[144,128]{1,0:T(1,128)}', space=vmem, size = 0x12000, scoped, tag = 'internal scratch']
  %s0 = inlined_call_operand.vmem [shape: f32[8,512], index: 0, kind: input, shape index: {}]
  %s1 = inlined_call_operand.hbm [shape: bf16[512,384], index: 1, kind: input, shape index: {}]
  %s2 = inlined_call_operand.vmem [shape: f32[1,384], index: 2, kind: input, shape index: {}]
  %s3 = inlined_call_operand.hbm [shape: bf16[384,128], index: 3, kind: input, shape index: {}]
  %s4 = inlined_call_operand.vmem [shape: f32[1,128], index: 4, kind: input, shape index: {}]
  %s5 = inlined_call_operand.vmem [shape: f32[8,128], index: 5, kind: output, shape index: {}]
  %s6 = sld [smem:[#allocation0]]
  $region38: #{cnn_model_forward.1} parent=0
    _
  %s8 = ssub.s32 1, %s6
  %s9 = scalar_select 0, %s8, %s6
  $region1: #{cnn_model_forward.1} parent=0
    #allocation2 [shape = 'u8[393216]{0}', space=vmem, size = 0x60000, scoped, tag = 'input window, operand 1, single buffered']
    #allocation3 [shape = 's32[1]{0}', space=sflag, size = 0x4, scoped, tag = 'scoped memory for cnn_model_forward.1']
    #allocation4 [shape = 'u8[98304]{0}', space=vmem, size = 0x18000, scoped, tag = 'input window, operand 3, single buffered']
    #allocation5 [shape = 's32[1]{0}', space=sflag, size = 0x4, scoped, tag = 'scoped memory for cnn_model_forward.1']
    %10 = vsyncpa [#allocation3], 0
    %11 = vsyncpa [#allocation5], 0
    // Predicated region
    $region2: #{cnn_model_forward.1} parent=1 // pred_check
      _
    $region3: #{cnn_model_forward.1} parent=1 // pred_check_branch
      %13 = sbr.rel (0) target = $region5
    $region4: #{cnn_model_forward.1} parent=1 // pred_region
      _
    $region5: #{cnn_model_forward.1} parent=1 // pred_fallthru
      _
    // Predicated region
    $region6: #{cnn_model_forward.1} parent=1 // pred_check
      _
    $region7: #{cnn_model_forward.1} parent=1 // pred_check_branch
      %15 = sbr.rel (0) target = $region9
    $region8: #{cnn_model_forward.1} parent=1 // pred_region
      %s17 = ssub.s32 12288, 12288
      %18 = vsyncadd [#allocation3], %s17
      %s19 = sshll.u32 [#allocation2], 4
      %s20 = int_to_ptr.vmem [resolvable:$true] %s19
      %25 = dma.hbm_to_vmem [thread:$0]  %s1, 12288, %s20, [#allocation3], 192, 192, 12
    $region9: #{cnn_model_forward.1} parent=1 // pred_fallthru
      _
    // Predicated region
    $region10: #{cnn_model_forward.1} parent=1 // pred_check
      _
    $region11: #{cnn_model_forward.1} parent=1 // pred_check_branch
      %27 = sbr.rel (0) target = $region13
    $region12: #{cnn_model_forward.1} parent=1 // pred_region
      _
    $region13: #{cnn_model_forward.1} parent=1 // pred_fallthru
      _
    // Predicated region
    $region14: #{cnn_model_forward.1} parent=1 // pred_check
      _
    $region15: #{cnn_model_forward.1} parent=1 // pred_check_branch
      %29 = sbr.rel (0) target = $region17
    $region16: #{cnn_model_forward.1} parent=1 // pred_region
      %s31 = ssub.s32 3072, 3072
      %32 = vsyncadd [#allocation5], %s31
      %s33 = sshll.u32 [#allocation4], 4
      %s34 = int_to_ptr.vmem [resolvable:$true] %s33
      %39 = dma.hbm_to_vmem [thread:$0]  %s3, 3072, %s34, [#allocation5], 64, 64, 4
    $region17: #{cnn_model_forward.1} parent=1 // pred_fallthru
      _
    // Predicated region
    $region18: #{cnn_model_forward.1} parent=1 // pred_check
      _
    $region19: #{cnn_model_forward.1} parent=1 // pred_check_branch
      %41 = sbr.rel (0) target = $region21
    $region20: #{cnn_model_forward.1} parent=1 // pred_region
      _
    $region21: #{cnn_model_forward.1} parent=1 // pred_fallthru
      _
    // Predicated region
    $region22: #{cnn_model_forward.1} parent=1 // pred_check
      _
    $region23: #{cnn_model_forward.1} parent=1 // pred_check_branch
      %43 = sbr.rel (0) target = $region25
    $region24: #{cnn_model_forward.1} parent=1 // pred_region
      %44 = dma.done [#allocation3], 12288
    $region25: #{cnn_model_forward.1} parent=1 // pred_fallthru
      _
    // Predicated region
    $region26: #{cnn_model_forward.1} parent=1 // pred_check
      _
    $region27: #{cnn_model_forward.1} parent=1 // pred_check_branch
      %46 = sbr.rel (0) target = $region29
    $region28: #{cnn_model_forward.1} parent=1 // pred_region
      %47 = dma.done [#allocation5], 3072
    $region29: #{cnn_model_forward.1} parent=1 // pred_fallthru
      _
    %v49 = vld [vmem:[%s0] sm:$0xff]
    %v50 = vld [vmem:[%s0 + $0x8] sm:$0xff]
    %v51 = vld [vmem:[%s0 + $0x10] sm:$0xff]
    %v52 = vld [vmem:[%s0 + $0x18] sm:$0xff]
    %v53 = vpack.c.bf16 %v49, %v49
    %v54 = vpack.c.bf16 %v50, %v50
    %v55 = vpack.c.bf16 %v51, %v51
    %v56 = vpack.c.bf16 %v52, %v52
    %v57 = vld [vmem:[#allocation2] sm:$0xff]
    %v58 = vld [vmem:[#allocation2 + $0x8] sm:$0xf]
    %v59 = vld [vmem:[#allocation2 + $0xc] sm:$0xff]
    %v60 = vld [vmem:[#allocation2 + $0x14] sm:$0xf]
    %v61 = vld [vmem:[#allocation2 + $0x18] sm:$0xff]
    %v62 = vld [vmem:[#allocation2 + $0x20] sm:$0xf]
    %v63 = vld [vmem:[#allocation2 + $0x24] sm:$0xff]
    %v64 = vld [vmem:[#allocation2 + $0x2c] sm:$0xf]
    %v65 = vld [vmem:[#allocation2 + $0x30] sm:$0xff]
    %v66 = vld [vmem:[#allocation2 + $0x38] sm:$0xf]
    %v67 = vld [vmem:[#allocation2 + $0x3c] sm:$0xff]
    %v68 = vld [vmem:[#allocation2 + $0x44] sm:$0xf]
    %v69 = vld [vmem:[#allocation2 + $0x48] sm:$0xff]
    %v70 = vld [vmem:[#allocation2 + $0x50] sm:$0xf]
    %v71 = vld [vmem:[#allocation2 + $0x54] sm:$0xff]
    %v72 = vld [vmem:[#allocation2 + $0x5c] sm:$0xf]
    %v73 = vld [vmem:[#allocation2 + $0x60] sm:$0xff]
    %v74 = vld [vmem:[#allocation2 + $0x68] sm:$0xf]
    %v75 = vld [vmem:[#allocation2 + $0x6c] sm:$0xff]
    %v76 = vld [vmem:[#allocation2 + $0x74] sm:$0xf]
    %v77 = vld [vmem:[#allocation2 + $0x78] sm:$0xff]
    %v78 = vld [vmem:[#allocation2 + $0x80] sm:$0xf]
    %v79 = vld [vmem:[#allocation2 + $0x84] sm:$0xff]
    %v80 = vld [vmem:[#allocation2 + $0x8c] sm:$0xf]
    %v81 = vld [vmem:[#allocation2 + $0x90] sm:$0xff]
    %v82 = vld [vmem:[#allocation2 + $0x98] sm:$0xf]
    %v83 = vld [vmem:[#allocation2 + $0x9c] sm:$0xff]
    %v84 = vld [vmem:[#allocation2 + $0xa4] sm:$0xf]
    %v85 = vld [vmem:[#allocation2 + $0xa8] sm:$0xff]
    %v86 = vld [vmem:[#allocation2 + $0xb0] sm:$0xf]
    %v87 = vld [vmem:[#allocation2 + $0xb4] sm:$0xff]
    %v88 = vld [vmem:[#allocation2 + $0xbc] sm:$0xf]
    %v89 = vld [vmem:[#allocation2 + $0xc0] sm:$0xff]
    %v90 = vld [vmem:[#allocation2 + $0xc8] sm:$0xf]
    %v91 = vld [vmem:[#allocation2 + $0xcc] sm:$0xff]
    %v92 = vld [vmem:[#allocation2 + $0xd4] sm:$0xf]
    %v93 = vld [vmem:[#allocation2 + $0xd8] sm:$0xff]
    %v94 = vld [vmem:[#allocation2 + $0xe0] sm:$0xf]
    %v95 = vld [vmem:[#allocation2 + $0xe4] sm:$0xff]
    %v96 = vld [vmem:[#allocation2 + $0xec] sm:$0xf]
    %v97 = vld [vmem:[#allocation2 + $0xf0] sm:$0xff]
    %v98 = vld [vmem:[#allocation2 + $0xf8] sm:$0xf]
    %v99 = vld [vmem:[#allocation2 + $0xfc] sm:$0xff]
    %v100 = vld [vmem:[#allocation2 + $0x104] sm:$0xf]
    %v101 = vld [vmem:[#allocation2 + $0x108] sm:$0xff]
    %v102 = vld [vmem:[#allocation2 + $0x110] sm:$0xf]
    %v103 = vld [vmem:[#allocation2 + $0x114] sm:$0xff]
    %v104 = vld [vmem:[#allocation2 + $0x11c] sm:$0xf]
    %v105 = vld [vmem:[#allocation2 + $0x120] sm:$0xff]
    %v106 = vld [vmem:[#allocation2 + $0x128] sm:$0xf]
    %v107 = vld [vmem:[#allocation2 + $0x12c] sm:$0xff]
    %v108 = vld [vmem:[#allocation2 + $0x134] sm:$0xf]
    %v109 = vld [vmem:[#allocation2 + $0x138] sm:$0xff]
    %v110 = vld [vmem:[#allocation2 + $0x140] sm:$0xf]
    %v111 = vld [vmem:[#allocation2 + $0x144] sm:$0xff]
    %v112 = vld [vmem:[#allocation2 + $0x14c] sm:$0xf]
    %v113 = vld [vmem:[#allocation2 + $0x150] sm:$0xff]
    %v114 = vld [vmem:[#allocation2 + $0x158] sm:$0xf]
    %v115 = vld [vmem:[#allocation2 + $0x15c] sm:$0xff]
    %v116 = vld [vmem:[#allocation2 + $0x164] sm:$0xf]
    %v117 = vld [vmem:[#allocation2 + $0x168] sm:$0xff]
    %v118 = vld [vmem:[#allocation2 + $0x170] sm:$0xf]
    %v119 = vld [vmem:[#allocation2 + $0x174] sm:$0xff]
    %v120 = vld [vmem:[#allocation2 + $0x17c] sm:$0xf]
    %v121 = vld [vmem:[#allocation2 + $0x180] sm:$0xff]
    %v122 = vld [vmem:[#allocation2 + $0x188] sm:$0xf]
    %v123 = vld [vmem:[#allocation2 + $0x18c] sm:$0xff]
    %v124 = vld [vmem:[#allocation2 + $0x194] sm:$0xf]
    %v125 = vld [vmem:[#allocation2 + $0x198] sm:$0xff]
    %v126 = vld [vmem:[#allocation2 + $0x1a0] sm:$0xf]
    %v127 = vld [vmem:[#allocation2 + $0x1a4] sm:$0xff]
    %v128 = vld [vmem:[#allocation2 + $0x1ac] sm:$0xf]
    %v129 = vld [vmem:[#allocation2 + $0x1b0] sm:$0xff]
    %v130 = vld [vmem:[#allocation2 + $0x1b8] sm:$0xf]
    %v131 = vld [vmem:[#allocation2 + $0x1bc] sm:$0xff]
    %v132 = vld [vmem:[#allocation2 + $0x1c4] sm:$0xf]
    %v133 = vld [vmem:[#allocation2 + $0x1c8] sm:$0xff]
    %v134 = vld [vmem:[#allocation2 + $0x1d0] sm:$0xf]
    %v135 = vld [vmem:[#allocation2 + $0x1d4] sm:$0xff]
    %v136 = vld [vmem:[#allocation2 + $0x1dc] sm:$0xf]
    %v137 = vld [vmem:[#allocation2 + $0x1e0] sm:$0xff]
    %v138 = vld [vmem:[#allocation2 + $0x1e8] sm:$0xf]
    %v139 = vld [vmem:[#allocation2 + $0x1ec] sm:$0xff]
    %v140 = vld [vmem:[#allocation2 + $0x1f4] sm:$0xf]
    %v141 = vld [vmem:[#allocation2 + $0x1f8] sm:$0xff]
    %v142 = vld [vmem:[#allocation2 + $0x200] sm:$0xf]
    %v143 = vld [vmem:[#allocation2 + $0x204] sm:$0xff]
    %v144 = vld [vmem:[#allocation2 + $0x20c] sm:$0xf]
    %v145 = vld [vmem:[#allocation2 + $0x210] sm:$0xff]
    %v146 = vld [vmem:[#allocation2 + $0x218] sm:$0xf]
    %v147 = vld [vmem:[#allocation2 + $0x21c] sm:$0xff]
    %v148 = vld [vmem:[#allocation2 + $0x224] sm:$0xf]
    %v149 = vld [vmem:[#allocation2 + $0x228] sm:$0xff]
    %v150 = vld [vmem:[#allocation2 + $0x230] sm:$0xf]
    %v151 = vld [vmem:[#allocation2 + $0x234] sm:$0xff]
    %v152 = vld [vmem:[#allocation2 + $0x23c] sm:$0xf]
    %v153 = vld [vmem:[#allocation2 + $0x240] sm:$0xff]
    %v154 = vld [vmem:[#allocation2 + $0x248] sm:$0xf]
    %v155 = vld [vmem:[#allocation2 + $0x24c] sm:$0xff]
    %v156 = vld [vmem:[#allocation2 + $0x254] sm:$0xf]
    %v157 = vld [vmem:[#allocation2 + $0x258] sm:$0xff]
    %v158 = vld [vmem:[#allocation2 + $0x260] sm:$0xf]
    %v159 = vld [vmem:[#allocation2 + $0x264] sm:$0xff]
    %v160 = vld [vmem:[#allocation2 + $0x26c] sm:$0xf]
    %v161 = vld [vmem:[#allocation2 + $0x270] sm:$0xff]
    %v162 = vld [vmem:[#allocation2 + $0x278] sm:$0xf]
    %v163 = vld [vmem:[#allocation2 + $0x27c] sm:$0xff]
    %v164 = vld [vmem:[#allocation2 + $0x284] sm:$0xf]
    %v165 = vld [vmem:[#allocation2 + $0x288] sm:$0xff]
    %v166 = vld [vmem:[#allocation2 + $0x290] sm:$0xf]
    %v167 = vld [vmem:[#allocation2 + $0x294] sm:$0xff]
    %v168 = vld [vmem:[#allocation2 + $0x29c] sm:$0xf]
    %v169 = vld [vmem:[#allocation2 + $0x2a0] sm:$0xff]
    %v170 = vld [vmem:[#allocation2 + $0x2a8] sm:$0xf]
    %v171 = vld [vmem:[#allocation2 + $0x2ac] sm:$0xff]
    %v172 = vld [vmem:[#allocation2 + $0x2b4] sm:$0xf]
    %v173 = vld [vmem:[#allocation2 + $0x2b8] sm:$0xff]
    %v174 = vld [vmem:[#allocation2 + $0x2c0] sm:$0xf]
    %v175 = vld [vmem:[#allocation2 + $0x2c4] sm:$0xff]
    %v176 = vld [vmem:[#allocation2 + $0x2cc] sm:$0xf]
    %v177 = vld [vmem:[#allocation2 + $0x2d0] sm:$0xff]
    %v178 = vld [vmem:[#allocation2 + $0x2d8] sm:$0xf]
    %v179 = vld [vmem:[#allocation2 + $0x2dc] sm:$0xff]
    %v180 = vld [vmem:[#allocation2 + $0x2e4] sm:$0xf]
    %v181 = vld [vmem:[#allocation2 + $0x2e8] sm:$0xff]
    %v182 = vld [vmem:[#allocation2 + $0x2f0] sm:$0xf]
    %v183 = vld [vmem:[#allocation2 + $0x2f4] sm:$0xff]
    %v184 = vld [vmem:[#allocation2 + $0x2fc] sm:$0xf]
    %v185 = vld [vmem:[%s2] sm:$0x7]
    %v187 = vlaneseq
    %v188 = vshrl.u32 %v187, 7
    %v189 = vsub.s32 0, %v188
    %v190 = vrot.slane %v185, %v189
    %v191 = vlaneseq
    %v192 = vshrl.u32 %v191, 7
    %v193 = vsub.s32 1, %v192
    %v194 = vrot.slane %v185, %v193
    %v195 = vlaneseq
    %v196 = vshrl.u32 %v195, 7
    %v197 = vsub.s32 2, %v196
    %v198 = vrot.slane %v185, %v197
    %v330 = vunpack.c.l.b16 %v57
    %v331 = vunpack.c.h.b16 %v57
    %v332 = vunpack.c.l.b16 %v58
    %v333 = vunpack.c.l.b16 %v59
    %v334 = vunpack.c.h.b16 %v59
    %v335 = vunpack.c.l.b16 %v60
    %v336 = vunpack.c.l.b16 %v61
    %v337 = vunpack.c.h.b16 %v61
    %v338 = vunpack.c.l.b16 %v62
    %v339 = vunpack.c.l.b16 %v63
    %v340 = vunpack.c.h.b16 %v63
    %v341 = vunpack.c.l.b16 %v64
    %v342 = vunpack.c.l.b16 %v65
    %v343 = vunpack.c.h.b16 %v65
    %v344 = vunpack.c.l.b16 %v66
    %v345 = vunpack.c.l.b16 %v67
    %v346 = vunpack.c.h.b16 %v67
    %v347 = vunpack.c.l.b16 %v68
    %v348 = vunpack.c.l.b16 %v69
    %v349 = vunpack.c.h.b16 %v69
    %v350 = vunpack.c.l.b16 %v70
    %v351 = vunpack.c.l.b16 %v71
    %v352 = vunpack.c.h.b16 %v71
    %v353 = vunpack.c.l.b16 %v72
    %v354 = vunpack.c.l.b16 %v73
    %v355 = vunpack.c.h.b16 %v73
    %v356 = vunpack.c.l.b16 %v74
    %v357 = vunpack.c.l.b16 %v75
    %v358 = vunpack.c.h.b16 %v75
    %v359 = vunpack.c.l.b16 %v76
    %v360 = vunpack.c.l.b16 %v77
    %v361 = vunpack.c.h.b16 %v77
    %v362 = vunpack.c.l.b16 %v78
    %v363 = vunpack.c.l.b16 %v79
    %v364 = vunpack.c.h.b16 %v79
    %v365 = vunpack.c.l.b16 %v80
    %v366 = vunpack.c.l.b16 %v81
    %v367 = vunpack.c.h.b16 %v81
    %v368 = vunpack.c.l.b16 %v82
    %v369 = vunpack.c.l.b16 %v83
    %v370 = vunpack.c.h.b16 %v83
    %v371 = vunpack.c.l.b16 %v84
    %v372 = vunpack.c.l.b16 %v85
    %v373 = vunpack.c.h.b16 %v85
    %v374 = vunpack.c.l.b16 %v86
    %v375 = vunpack.c.l.b16 %v87
    %v376 = vunpack.c.h.b16 %v87
    %v377 = vunpack.c.l.b16 %v88
    %v378 = vunpack.c.l.b16 %v89
    %v379 = vunpack.c.h.b16 %v89
    %v380 = vunpack.c.l.b16 %v90
    %v381 = vunpack.c.l.b16 %v91
    %v382 = vunpack.c.h.b16 %v91
    %v383 = vunpack.c.l.b16 %v92
    %v384 = vunpack.c.l.b16 %v93
    %v385 = vunpack.c.h.b16 %v93
    %v386 = vunpack.c.l.b16 %v94
    %v387 = vunpack.c.l.b16 %v95
    %v388 = vunpack.c.h.b16 %v95
    %v389 = vunpack.c.l.b16 %v96
    %v390 = vunpack.c.l.b16 %v97
    %v391 = vunpack.c.h.b16 %v97
    %v392 = vunpack.c.l.b16 %v98
    %v393 = vunpack.c.l.b16 %v99
    %v394 = vunpack.c.h.b16 %v99
    %v395 = vunpack.c.l.b16 %v100
    %v396 = vunpack.c.l.b16 %v101
    %v397 = vunpack.c.h.b16 %v101
    %v398 = vunpack.c.l.b16 %v102
    %v399 = vunpack.c.l.b16 %v103
    %v400 = vunpack.c.h.b16 %v103
    %v401 = vunpack.c.l.b16 %v104
    %v402 = vunpack.c.l.b16 %v105
    %v403 = vunpack.c.h.b16 %v105
    %v404 = vunpack.c.l.b16 %v106
    %v405 = vunpack.c.l.b16 %v107
    %v406 = vunpack.c.h.b16 %v107
    %v407 = vunpack.c.l.b16 %v108
    %v408 = vunpack.c.l.b16 %v109
    %v409 = vunpack.c.h.b16 %v109
    %v410 = vunpack.c.l.b16 %v110
    %v411 = vunpack.c.l.b16 %v111
    %v412 = vunpack.c.h.b16 %v111
    %v413 = vunpack.c.l.b16 %v112
    %v414 = vunpack.c.l.b16 %v113
    %v415 = vunpack.c.h.b16 %v113
    %v416 = vunpack.c.l.b16 %v114
    %v417 = vunpack.c.l.b16 %v115
    %v418 = vunpack.c.h.b16 %v115
    %v419 = vunpack.c.l.b16 %v116
    %v420 = vunpack.c.l.b16 %v117
    %v421 = vunpack.c.h.b16 %v117
    %v422 = vunpack.c.l.b16 %v118
    %v423 = vunpack.c.l.b16 %v119
    %v424 = vunpack.c.h.b16 %v119
    %v425 = vunpack.c.l.b16 %v120
    %v426 = vunpack.c.l.b16 %v121
    %v427 = vunpack.c.h.b16 %v121
    %v428 = vunpack.c.l.b16 %v122
    %v429 = vunpack.c.l.b16 %v123
    %v430 = vunpack.c.h.b16 %v123
    %v431 = vunpack.c.l.b16 %v124
    %v432 = vunpack.c.l.b16 %v125
    %v433 = vunpack.c.h.b16 %v125
    %v434 = vunpack.c.l.b16 %v126
    %v435 = vunpack.c.l.b16 %v127
    %v436 = vunpack.c.h.b16 %v127
    %v437 = vunpack.c.l.b16 %v128
    %v438 = vunpack.c.l.b16 %v129
    %v439 = vunpack.c.h.b16 %v129
    %v440 = vunpack.c.l.b16 %v130
    %v441 = vunpack.c.l.b16 %v131
    %v442 = vunpack.c.h.b16 %v131
    %v443 = vunpack.c.l.b16 %v132
    %v444 = vunpack.c.l.b16 %v133
    %v445 = vunpack.c.h.b16 %v133
    %v446 = vunpack.c.l.b16 %v134
    %v447 = vunpack.c.l.b16 %v135
    %v448 = vunpack.c.h.b16 %v135
    %v449 = vunpack.c.l.b16 %v136
    %v450 = vunpack.c.l.b16 %v137
    %v451 = vunpack.c.h.b16 %v137
    %v452 = vunpack.c.l.b16 %v138
    %v453 = vunpack.c.l.b16 %v139
    %v454 = vunpack.c.h.b16 %v139
    %v455 = vunpack.c.l.b16 %v140
    %v456 = vunpack.c.l.b16 %v141
    %v457 = vunpack.c.h.b16 %v141
    %v458 = vunpack.c.l.b16 %v142
    %v459 = vunpack.c.l.b16 %v143
    %v460 = vunpack.c.h.b16 %v143
    %v461 = vunpack.c.l.b16 %v144
    %v462 = vunpack.c.l.b16 %v145
    %v463 = vunpack.c.h.b16 %v145
    %v464 = vunpack.c.l.b16 %v146
    %v465 = vunpack.c.l.b16 %v147
    %v466 = vunpack.c.h.b16 %v147
    %v467 = vunpack.c.l.b16 %v148
    %v468 = vunpack.c.l.b16 %v149
    %v469 = vunpack.c.h.b16 %v149
    %v470 = vunpack.c.l.b16 %v150
    %v471 = vunpack.c.l.b16 %v151
    %v472 = vunpack.c.h.b16 %v151
    %v473 = vunpack.c.l.b16 %v152
    %v474 = vunpack.c.l.b16 %v153
    %v475 = vunpack.c.h.b16 %v153
    %v476 = vunpack.c.l.b16 %v154
    %v477 = vunpack.c.l.b16 %v155
    %v478 = vunpack.c.h.b16 %v155
    %v479 = vunpack.c.l.b16 %v156
    %v480 = vunpack.c.l.b16 %v157
    %v481 = vunpack.c.h.b16 %v157
    %v482 = vunpack.c.l.b16 %v158
    %v483 = vunpack.c.l.b16 %v159
    %v484 = vunpack.c.h.b16 %v159
    %v485 = vunpack.c.l.b16 %v160
    %v486 = vunpack.c.l.b16 %v161
    %v487 = vunpack.c.h.b16 %v161
    %v488 = vunpack.c.l.b16 %v162
    %v489 = vunpack.c.l.b16 %v163
    %v490 = vunpack.c.h.b16 %v163
    %v491 = vunpack.c.l.b16 %v164
    %v492 = vunpack.c.l.b16 %v165
    %v493 = vunpack.c.h.b16 %v165
    %v494 = vunpack.c.l.b16 %v166
    %v495 = vunpack.c.l.b16 %v167
    %v496 = vunpack.c.h.b16 %v167
    %v497 = vunpack.c.l.b16 %v168
    %v498 = vunpack.c.l.b16 %v169
    %v499 = vunpack.c.h.b16 %v169
    %v500 = vunpack.c.l.b16 %v170
    %v501 = vunpack.c.l.b16 %v171
    %v502 = vunpack.c.h.b16 %v171
    %v503 = vunpack.c.l.b16 %v172
    %v504 = vunpack.c.l.b16 %v173
    %v505 = vunpack.c.h.b16 %v173
    %v506 = vunpack.c.l.b16 %v174
    %v507 = vunpack.c.l.b16 %v175
    %v508 = vunpack.c.h.b16 %v175
    %v509 = vunpack.c.l.b16 %v176
    %v510 = vunpack.c.l.b16 %v177
    %v511 = vunpack.c.h.b16 %v177
    %v512 = vunpack.c.l.b16 %v178
    %v513 = vunpack.c.l.b16 %v179
    %v514 = vunpack.c.h.b16 %v179
    %v515 = vunpack.c.l.b16 %v180
    %v516 = vunpack.c.l.b16 %v181
    %v517 = vunpack.c.h.b16 %v181
    %v518 = vunpack.c.l.b16 %v182
    %v519 = vunpack.c.l.b16 %v183
    %v520 = vunpack.c.h.b16 %v183
    %v521 = vunpack.c.l.b16 %v184
    %v522 = vpack.c.b16 %v333, %v330
    %v523 = vpack.c.b16 %v334, %v331
    %v524 = vpack.c.b16 %v335, %v332
    %v525 = vpack.c.b16 %v339, %v336
    %v526 = vpack.c.b16 %v340, %v337
    %v527 = vpack.c.b16 %v341, %v338
    %v528 = vpack.c.b16 %v345, %v342
    %v529 = vpack.c.b16 %v346, %v343
    %v530 = vpack.c.b16 %v347, %v344
    %v531 = vpack.c.b16 %v351, %v348
    %v532 = vpack.c.b16 %v352, %v349
    %v533 = vpack.c.b16 %v353, %v350
    %v534 = vpack.c.b16 %v357, %v354
    %v535 = vpack.c.b16 %v358, %v355
    %v536 = vpack.c.b16 %v359, %v356
    %v537 = vpack.c.b16 %v363, %v360
    %v538 = vpack.c.b16 %v364, %v361
    %v539 = vpack.c.b16 %v365, %v362
    %v540 = vpack.c.b16 %v369, %v366
    %v541 = vpack.c.b16 %v370, %v367
    %v542 = vpack.c.b16 %v371, %v368
    %v543 = vpack.c.b16 %v375, %v372
    %v544 = vpack.c.b16 %v376, %v373
    %v545 = vpack.c.b16 %v377, %v374
    %v546 = vpack.c.b16 %v381, %v378
    %v547 = vpack.c.b16 %v382, %v379
    %v548 = vpack.c.b16 %v383, %v380
    %v549 = vpack.c.b16 %v387, %v384
    %v550 = vpack.c.b16 %v388, %v385
    %v551 = vpack.c.b16 %v389, %v386
    %v552 = vpack.c.b16 %v393, %v390
    %v553 = vpack.c.b16 %v394, %v391
    %v554 = vpack.c.b16 %v395, %v392
    %v555 = vpack.c.b16 %v399, %v396
    %v556 = vpack.c.b16 %v400, %v397
    %v557 = vpack.c.b16 %v401, %v398
    %v558 = vpack.c.b16 %v405, %v402
    %v559 = vpack.c.b16 %v406, %v403
    %v560 = vpack.c.b16 %v407, %v404
    %v561 = vpack.c.b16 %v411, %v408
    %v562 = vpack.c.b16 %v412, %v409
    %v563 = vpack.c.b16 %v413, %v410
    %v564 = vpack.c.b16 %v417, %v414
    %v565 = vpack.c.b16 %v418, %v415
    %v566 = vpack.c.b16 %v419, %v416
    %v567 = vpack.c.b16 %v423, %v420
    %v568 = vpack.c.b16 %v424, %v421
    %v569 = vpack.c.b16 %v425, %v422
    %v570 = vpack.c.b16 %v429, %v426
    %v571 = vpack.c.b16 %v430, %v427
    %v572 = vpack.c.b16 %v431, %v428
    %v573 = vpack.c.b16 %v435, %v432
    %v574 = vpack.c.b16 %v436, %v433
    %v575 = vpack.c.b16 %v437, %v434
    %v576 = vpack.c.b16 %v441, %v438
    %v577 = vpack.c.b16 %v442, %v439
    %v578 = vpack.c.b16 %v443, %v440
    %v579 = vpack.c.b16 %v447, %v444
    %v580 = vpack.c.b16 %v448, %v445
    %v581 = vpack.c.b16 %v449, %v446
    %v582 = vpack.c.b16 %v453, %v450
    %v583 = vpack.c.b16 %v454, %v451
    %v584 = vpack.c.b16 %v455, %v452
    %v585 = vpack.c.b16 %v459, %v456
    %v586 = vpack.c.b16 %v460, %v457
    %v587 = vpack.c.b16 %v461, %v458
    %v588 = vpack.c.b16 %v465, %v462
    %v589 = vpack.c.b16 %v466, %v463
    %v590 = vpack.c.b16 %v467, %v464
    %v591 = vpack.c.b16 %v471, %v468
    %v592 = vpack.c.b16 %v472, %v469
    %v593 = vpack.c.b16 %v473, %v470
    %v594 = vpack.c.b16 %v477, %v474
    %v595 = vpack.c.b16 %v478, %v475
    %v596 = vpack.c.b16 %v479, %v476
    %v597 = vpack.c.b16 %v483, %v480
    %v598 = vpack.c.b16 %v484, %v481
    %v599 = vpack.c.b16 %v485, %v482
    %v600 = vpack.c.b16 %v489, %v486
    %v601 = vpack.c.b16 %v490, %v487
    %v602 = vpack.c.b16 %v491, %v488
    %v603 = vpack.c.b16 %v495, %v492
    %v604 = vpack.c.b16 %v496, %v493
    %v605 = vpack.c.b16 %v497, %v494
    %v606 = vpack.c.b16 %v501, %v498
    %v607 = vpack.c.b16 %v502, %v499
    %v608 = vpack.c.b16 %v503, %v500
    %v609 = vpack.c.b16 %v507, %v504
    %v610 = vpack.c.b16 %v508, %v505
    %v611 = vpack.c.b16 %v509, %v506
    %v612 = vpack.c.b16 %v513, %v510
    %v613 = vpack.c.b16 %v514, %v511
    %v614 = vpack.c.b16 %v515, %v512
    %v615 = vpack.c.b16 %v519, %v516
    %v616 = vpack.c.b16 %v520, %v517
    %v617 = vpack.c.b16 %v521, %v518
    %714 = vmatprep.subr.bf16.mxu0 %v544
    %715 = vmatpush1.bf16.msra.mxu0 %v543
    %716 = vmatprep.subr.bf16.mxu0 %v541
    %717 = vmatpush1.bf16.msra.mxu0 %v540
    %718 = vmatprep.subr.bf16.mxu0 %v538
    %719 = vmatpush1.bf16.msra.mxu0 %v537
    %720 = vmatprep.subr.bf16.mxu0 %v535
    %721 = vmatpush1.bf16.msra.mxu0 %v534
    %722 = vmatprep.subr.bf16.mxu0 %v532
    %723 = vmatpush1.bf16.msra.mxu0 %v531
    %724 = vmatprep.subr.bf16.mxu0 %v529
    %725 = vmatpush1.bf16.msra.mxu0 %v528
    %726 = vmatprep.subr.bf16.mxu0 %v526
    %727 = vmatpush1.bf16.msra.mxu0 %v525
    %728 = vmatprep.subr.bf16.mxu0 %v523
    %729 = vmatpush1.bf16.msra.mxu0 %v522
    %730 = vmatprep.subr.bf16.mxu0 %v568
    %731 = vmatpush2.bf16.msra.mxu0 %v567
    %732 = vmatprep.subr.bf16.mxu0 %v565
    %733 = vmatpush2.bf16.msra.mxu0 %v564
    %734 = vmatprep.subr.bf16.mxu0 %v562
    %735 = vmatpush2.bf16.msra.mxu0 %v561
    %736 = vmatprep.subr.bf16.mxu0 %v559
    %737 = vmatpush2.bf16.msra.mxu0 %v558
    %738 = vmatprep.subr.bf16.mxu0 %v556
    %739 = vmatpush2.bf16.msra.mxu0 %v555
    %740 = vmatprep.subr.bf16.mxu0 %v553
    %741 = vmatpush2.bf16.msra.mxu0 %v552
    %742 = vmatprep.subr.bf16.mxu0 %v550
    %743 = vmatpush2.bf16.msra.mxu0 %v549
    %744 = vmatprep.subr.bf16.mxu0 %v547
    %745 = vmatpush2.bf16.msra.mxu0 %v546
    %746 = vmatprep.mubr.bf16.mxu0 %v54
    %747 = vmatmul.mubr.bf16.gmra.mxu0 %v53
    %v748 = vpop.f32.mrf.mxu0
    %v749 = vadd.f32 %v190, %v748
    %v750 = vpop.f32.mrf.mxu0
    %v751 = vadd.f32 %v194, %v750
    %v752 = vpop.f32.mrf.mxu0
    %v753 = vpop.f32.mrf.mxu0
    %754 = vdwg.mxu0
    %755 = vmatprep.subr.bf16.mxu0 %v592
    %756 = vmatpush1.bf16.msra.mxu0 %v591
    %757 = vmatprep.subr.bf16.mxu0 %v589
    %758 = vmatpush1.bf16.msra.mxu0 %v588
    %759 = vmatprep.subr.bf16.mxu0 %v586
    %760 = vmatpush1.bf16.msra.mxu0 %v585
    %761 = vmatprep.subr.bf16.mxu0 %v583
    %762 = vmatpush1.bf16.msra.mxu0 %v582
    %763 = vmatprep.subr.bf16.mxu0 %v580
    %764 = vmatpush1.bf16.msra.mxu0 %v579
    %765 = vmatprep.subr.bf16.mxu0 %v577
    %766 = vmatpush1.bf16.msra.mxu0 %v576
    %767 = vmatprep.subr.bf16.mxu0 %v574
    %768 = vmatpush1.bf16.msra.mxu0 %v573
    %769 = vmatprep.subr.bf16.mxu0 %v571
    %770 = vmatpush1.bf16.msra.mxu0 %v570
    %771 = vmatprep.subr.bf16.mxu0 %v616
    %772 = vmatpush2.bf16.msra.mxu0 %v615
    %773 = vmatprep.subr.bf16.mxu0 %v613
    %774 = vmatpush2.bf16.msra.mxu0 %v612
    %775 = vmatprep.subr.bf16.mxu0 %v610
    %776 = vmatpush2.bf16.msra.mxu0 %v609
    %777 = vmatprep.subr.bf16.mxu0 %v607
    %778 = vmatpush2.bf16.msra.mxu0 %v606
    %779 = vmatprep.subr.bf16.mxu0 %v604
    %780 = vmatpush2.bf16.msra.mxu0 %v603
    %781 = vmatprep.subr.bf16.mxu0 %v601
    %782 = vmatpush2.bf16.msra.mxu0 %v600
    %783 = vmatprep.subr.bf16.mxu0 %v598
    %784 = vmatpush2.bf16.msra.mxu0 %v597
    %785 = vmatprep.subr.bf16.mxu0 %v595
    %786 = vmatpush2.bf16.msra.mxu0 %v594
    %787 = vmatprep.mubr.bf16.mxu0 %v56
    %788 = vmatmul.mubr.bf16.gmra.mxu0 %v55
    %v789 = vpop.f32.mrf.mxu0
    %v790 = vadd.f32 %v749, %v789
    %v791 = vpop.f32.mrf.mxu0
    %v792 = vadd.f32 %v751, %v791
    %v793 = vpop.f32.mrf.mxu0
    %v794 = vpop.f32.mrf.mxu0
    %795 = vdwg.mxu0
    %796 = vmatprep.subr.bf16.mxu0 0
    %797 = vmatpush1.bf16.msra.mxu0 %v545
    %798 = vmatprep.subr.bf16.mxu0 0
    %799 = vmatpush1.bf16.msra.mxu0 %v542
    %800 = vmatprep.subr.bf16.mxu0 0
    %801 = vmatpush1.bf16.msra.mxu0 %v539
    %802 = vmatprep.subr.bf16.mxu0 0
    %803 = vmatpush1.bf16.msra.mxu0 %v536
    %804 = vmatprep.subr.bf16.mxu0 0
    %805 = vmatpush1.bf16.msra.mxu0 %v533
    %806 = vmatprep.subr.bf16.mxu0 0
    %807 = vmatpush1.bf16.msra.mxu0 %v530
    %808 = vmatprep.subr.bf16.mxu0 0
    %809 = vmatpush1.bf16.msra.mxu0 %v527
    %810 = vmatprep.subr.bf16.mxu0 0
    %811 = vmatpush1.bf16.msra.mxu0 %v524
    %812 = vmatprep.subr.bf16.mxu0 0
    %813 = vmatpush2.bf16.msra.mxu0 %v569
    %814 = vmatprep.subr.bf16.mxu0 0
    %815 = vmatpush2.bf16.msra.mxu0 %v566
    %816 = vmatprep.subr.bf16.mxu0 0
    %817 = vmatpush2.bf16.msra.mxu0 %v563
    %818 = vmatprep.subr.bf16.mxu0 0
    %819 = vmatpush2.bf16.msra.mxu0 %v560
    %820 = vmatprep.subr.bf16.mxu0 0
    %821 = vmatpush2.bf16.msra.mxu0 %v557
    %822 = vmatprep.subr.bf16.mxu0 0
    %823 = vmatpush2.bf16.msra.mxu0 %v554
    %824 = vmatprep.subr.bf16.mxu0 0
    %825 = vmatpush2.bf16.msra.mxu0 %v551
    %826 = vmatprep.subr.bf16.mxu0 0
    %827 = vmatpush2.bf16.msra.mxu0 %v548
    %828 = vmatprep.mubr.bf16.mxu0 %v54
    %829 = vmatmul.mubr.bf16.gmra.mxu0 %v53
    %v830 = vpop.f32.mrf.mxu0
    %v831 = vadd.f32 %v198, %v830
    %v832 = vpop.f32.mrf.mxu0
    %v833 = vpop.f32.mrf.mxu0
    %v834 = vpop.f32.mrf.mxu0
    %835 = vdwg.mxu0
    %836 = vmatprep.subr.bf16.mxu0 0
    %837 = vmatpush1.bf16.msra.mxu0 %v593
    %838 = vmatprep.subr.bf16.mxu0 0
    %839 = vmatpush1.bf16.msra.mxu0 %v590
    %840 = vmatprep.subr.bf16.mxu0 0
    %841 = vmatpush1.bf16.msra.mxu0 %v587
    %842 = vmatprep.subr.bf16.mxu0 0
    %843 = vmatpush1.bf16.msra.mxu0 %v584
    %844 = vmatprep.subr.bf16.mxu0 0
    %845 = vmatpush1.bf16.msra.mxu0 %v581
    %846 = vmatprep.subr.bf16.mxu0 0
    %847 = vmatpush1.bf16.msra.mxu0 %v578
    %848 = vmatprep.subr.bf16.mxu0 0
    %849 = vmatpush1.bf16.msra.mxu0 %v575
    %850 = vmatprep.subr.bf16.mxu0 0
    %851 = vmatpush1.bf16.msra.mxu0 %v572
    %852 = vmatprep.subr.bf16.mxu0 0
    %853 = vmatpush2.bf16.msra.mxu0 %v617
    %854 = vmatprep.subr.bf16.mxu0 0
    %855 = vmatpush2.bf16.msra.mxu0 %v614
    %856 = vmatprep.subr.bf16.mxu0 0
    %857 = vmatpush2.bf16.msra.mxu0 %v611
    %858 = vmatprep.subr.bf16.mxu0 0
    %859 = vmatpush2.bf16.msra.mxu0 %v608
    %860 = vmatprep.subr.bf16.mxu0 0
    %861 = vmatpush2.bf16.msra.mxu0 %v605
    %862 = vmatprep.subr.bf16.mxu0 0
    %863 = vmatpush2.bf16.msra.mxu0 %v602
    %864 = vmatprep.subr.bf16.mxu0 0
    %865 = vmatpush2.bf16.msra.mxu0 %v599
    %866 = vmatprep.subr.bf16.mxu0 0
    %867 = vmatpush2.bf16.msra.mxu0 %v596
    %868 = vmatprep.mubr.bf16.mxu0 %v56
    %869 = vmatmul.mubr.bf16.gmra.mxu0 %v55
    %v870 = vpop.f32.mrf.mxu0
    %v871 = vadd.f32 %v831, %v870
    %v872 = vpop.f32.mrf.mxu0
    %v873 = vpop.f32.mrf.mxu0
    %v874 = vpop.f32.mrf.mxu0
    %875 = vdwg.mxu0
    %v876 = vmax.f32 %v790, 0.0
    %v877 = vmax.f32 %v792, 0.0
    %v878 = vmax.f32 %v871, 0.0
    %v879 = vpack.c.bf16 %v876, %v876
    %v880 = vpack.c.bf16 %v877, %v877
    %v881 = vpack.c.bf16 %v878, %v878
    %v882 = vld [vmem:[#allocation4] sm:$0xf]
    %v883 = vld [vmem:[#allocation4 + $0x4] sm:$0xf]
    %v884 = vld [vmem:[#allocation4 + $0x8] sm:$0xf]
    %v885 = vld [vmem:[#allocation4 + $0xc] sm:$0xf]
    %v886 = vld [vmem:[#allocation4 + $0x10] sm:$0xf]
    %v887 = vld [vmem:[#allocation4 + $0x14] sm:$0xf]
    %v888 = vld [vmem:[#allocation4 + $0x18] sm:$0xf]
    %v889 = vld [vmem:[#allocation4 + $0x1c] sm:$0xf]
    %v890 = vld [vmem:[#allocation4 + $0x20] sm:$0xf]
    %v891 = vld [vmem:[#allocation4 + $0x24] sm:$0xf]
    %v892 = vld [vmem:[#allocation4 + $0x28] sm:$0xf]
    %v893 = vld [vmem:[#allocation4 + $0x2c] sm:$0xf]
    %v894 = vld [vmem:[#allocation4 + $0x30] sm:$0xf]
    %v895 = vld [vmem:[#allocation4 + $0x34] sm:$0xf]
    %v896 = vld [vmem:[#allocation4 + $0x38] sm:$0xf]
    %v897 = vld [vmem:[#allocation4 + $0x3c] sm:$0xf]
    %v898 = vld [vmem:[#allocation4 + $0x40] sm:$0xf]
    %v899 = vld [vmem:[#allocation4 + $0x44] sm:$0xf]
    %v900 = vld [vmem:[#allocation4 + $0x48] sm:$0xf]
    %v901 = vld [vmem:[#allocation4 + $0x4c] sm:$0xf]
    %v902 = vld [vmem:[#allocation4 + $0x50] sm:$0xf]
    %v903 = vld [vmem:[#allocation4 + $0x54] sm:$0xf]
    %v904 = vld [vmem:[#allocation4 + $0x58] sm:$0xf]
    %v905 = vld [vmem:[#allocation4 + $0x5c] sm:$0xf]
    %v906 = vld [vmem:[#allocation4 + $0x60] sm:$0xf]
    %v907 = vld [vmem:[#allocation4 + $0x64] sm:$0xf]
    %v908 = vld [vmem:[#allocation4 + $0x68] sm:$0xf]
    %v909 = vld [vmem:[#allocation4 + $0x6c] sm:$0xf]
    %v910 = vld [vmem:[#allocation4 + $0x70] sm:$0xf]
    %v911 = vld [vmem:[#allocation4 + $0x74] sm:$0xf]
    %v912 = vld [vmem:[#allocation4 + $0x78] sm:$0xf]
    %v913 = vld [vmem:[#allocation4 + $0x7c] sm:$0xf]
    %v914 = vld [vmem:[#allocation4 + $0x80] sm:$0xf]
    %v915 = vld [vmem:[#allocation4 + $0x84] sm:$0xf]
    %v916 = vld [vmem:[#allocation4 + $0x88] sm:$0xf]
    %v917 = vld [vmem:[#allocation4 + $0x8c] sm:$0xf]
    %v918 = vld [vmem:[#allocation4 + $0x90] sm:$0xf]
    %v919 = vld [vmem:[#allocation4 + $0x94] sm:$0xf]
    %v920 = vld [vmem:[#allocation4 + $0x98] sm:$0xf]
    %v921 = vld [vmem:[#allocation4 + $0x9c] sm:$0xf]
    %v922 = vld [vmem:[#allocation4 + $0xa0] sm:$0xf]
    %v923 = vld [vmem:[#allocation4 + $0xa4] sm:$0xf]
    %v924 = vld [vmem:[#allocation4 + $0xa8] sm:$0xf]
    %v925 = vld [vmem:[#allocation4 + $0xac] sm:$0xf]
    %v926 = vld [vmem:[#allocation4 + $0xb0] sm:$0xf]
    %v927 = vld [vmem:[#allocation4 + $0xb4] sm:$0xf]
    %v928 = vld [vmem:[#allocation4 + $0xb8] sm:$0xf]
    %v929 = vld [vmem:[#allocation4 + $0xbc] sm:$0xf]
    %v930 = vld [vmem:[%s4] sm:$0x1]
    %v932 = vlaneseq
    %v933 = vshrl.u32 %v932, 7
    %v934 = vsub.s32 0, %v933
    %v935 = vrot.slane %v930, %v934
    %v985 = vunpack.c.l.b16 %v882
    %v986 = vunpack.c.l.b16 %v883
    %v987 = vunpack.c.l.b16 %v884
    %v988 = vunpack.c.l.b16 %v885
    %v989 = vunpack.c.l.b16 %v886
    %v990 = vunpack.c.l.b16 %v887
    %v991 = vunpack.c.l.b16 %v888
    %v992 = vunpack.c.l.b16 %v889
    %v993 = vunpack.c.l.b16 %v890
    %v994 = vunpack.c.l.b16 %v891
    %v995 = vunpack.c.l.b16 %v892
    %v996 = vunpack.c.l.b16 %v893
    %v997 = vunpack.c.l.b16 %v894
    %v998 = vunpack.c.l.b16 %v895
    %v999 = vunpack.c.l.b16 %v896
    %v1000 = vunpack.c.l.b16 %v897
    %v1001 = vunpack.c.l.b16 %v898
    %v1002 = vunpack.c.l.b16 %v899
    %v1003 = vunpack.c.l.b16 %v900
    %v1004 = vunpack.c.l.b16 %v901
    %v1005 = vunpack.c.l.b16 %v902
    %v1006 = vunpack.c.l.b16 %v903
    %v1007 = vunpack.c.l.b16 %v904
    %v1008 = vunpack.c.l.b16 %v905
    %v1009 = vunpack.c.l.b16 %v906
    %v1010 = vunpack.c.l.b16 %v907
    %v1011 = vunpack.c.l.b16 %v908
    %v1012 = vunpack.c.l.b16 %v909
    %v1013 = vunpack.c.l.b16 %v910
    %v1014 = vunpack.c.l.b16 %v911
    %v1015 = vunpack.c.l.b16 %v912
    %v1016 = vunpack.c.l.b16 %v913
    %v1017 = vunpack.c.l.b16 %v914
    %v1018 = vunpack.c.l.b16 %v915
    %v1019 = vunpack.c.l.b16 %v916
    %v1020 = vunpack.c.l.b16 %v917
    %v1021 = vunpack.c.l.b16 %v918
    %v1022 = vunpack.c.l.b16 %v919
    %v1023 = vunpack.c.l.b16 %v920
    %v1024 = vunpack.c.l.b16 %v921
    %v1025 = vunpack.c.l.b16 %v922
    %v1026 = vunpack.c.l.b16 %v923
    %v1027 = vunpack.c.l.b16 %v924
    %v1028 = vunpack.c.l.b16 %v925
    %v1029 = vunpack.c.l.b16 %v926
    %v1030 = vunpack.c.l.b16 %v927
    %v1031 = vunpack.c.l.b16 %v928
    %v1032 = vunpack.c.l.b16 %v929
    %v1033 = vpack.c.b16 %v986, %v985
    %v1034 = vpack.c.b16 %v988, %v987
    %v1035 = vpack.c.b16 %v990, %v989
    %v1036 = vpack.c.b16 %v992, %v991
    %v1037 = vpack.c.b16 %v994, %v993
    %v1038 = vpack.c.b16 %v996, %v995
    %v1039 = vpack.c.b16 %v998, %v997
    %v1040 = vpack.c.b16 %v1000, %v999
    %v1041 = vpack.c.b16 %v1002, %v1001
    %v1042 = vpack.c.b16 %v1004, %v1003
    %v1043 = vpack.c.b16 %v1006, %v1005
    %v1044 = vpack.c.b16 %v1008, %v1007
    %v1045 = vpack.c.b16 %v1010, %v1009
    %v1046 = vpack.c.b16 %v1012, %v1011
    %v1047 = vpack.c.b16 %v1014, %v1013
    %v1048 = vpack.c.b16 %v1016, %v1015
    %v1049 = vpack.c.b16 %v1018, %v1017
    %v1050 = vpack.c.b16 %v1020, %v1019
    %v1051 = vpack.c.b16 %v1022, %v1021
    %v1052 = vpack.c.b16 %v1024, %v1023
    %v1053 = vpack.c.b16 %v1026, %v1025
    %v1054 = vpack.c.b16 %v1028, %v1027
    %v1055 = vpack.c.b16 %v1030, %v1029
    %v1056 = vpack.c.b16 %v1032, %v1031
    %1081 = vmatprep.subr.bf16.mxu0 0
    %1082 = vmatpush1.bf16.msra.mxu0 %v1040
    %1083 = vmatprep.subr.bf16.mxu0 0
    %1084 = vmatpush1.bf16.msra.mxu0 %v1039
    %1085 = vmatprep.subr.bf16.mxu0 0
    %1086 = vmatpush1.bf16.msra.mxu0 %v1038
    %1087 = vmatprep.subr.bf16.mxu0 0
    %1088 = vmatpush1.bf16.msra.mxu0 %v1037
    %1089 = vmatprep.subr.bf16.mxu0 0
    %1090 = vmatpush1.bf16.msra.mxu0 %v1036
    %1091 = vmatprep.subr.bf16.mxu0 0
    %1092 = vmatpush1.bf16.msra.mxu0 %v1035
    %1093 = vmatprep.subr.bf16.mxu0 0
    %1094 = vmatpush1.bf16.msra.mxu0 %v1034
    %1095 = vmatprep.subr.bf16.mxu0 0
    %1096 = vmatpush1.bf16.msra.mxu0 %v1033
    %1097 = vmatprep.subr.bf16.mxu0 0
    %1098 = vmatpush2.bf16.msra.mxu0 %v1048
    %1099 = vmatprep.subr.bf16.mxu0 0
    %1100 = vmatpush2.bf16.msra.mxu0 %v1047
    %1101 = vmatprep.subr.bf16.mxu0 0
    %1102 = vmatpush2.bf16.msra.mxu0 %v1046
    %1103 = vmatprep.subr.bf16.mxu0 0
    %1104 = vmatpush2.bf16.msra.mxu0 %v1045
    %1105 = vmatprep.subr.bf16.mxu0 0
    %1106 = vmatpush2.bf16.msra.mxu0 %v1044
    %1107 = vmatprep.subr.bf16.mxu0 0
    %1108 = vmatpush2.bf16.msra.mxu0 %v1043
    %1109 = vmatprep.subr.bf16.mxu0 0
    %1110 = vmatpush2.bf16.msra.mxu0 %v1042
    %1111 = vmatprep.subr.bf16.mxu0 0
    %1112 = vmatpush2.bf16.msra.mxu0 %v1041
    %1113 = vmatprep.mubr.bf16.mxu0 %v880
    %1114 = vmatmul.mubr.bf16.gmra.mxu0 %v879
    %v1115 = vpop.f32.mrf.mxu0
    %v1116 = vadd.f32 %v935, %v1115
    %v1117 = vpop.f32.mrf.mxu0
    %v1118 = vpop.f32.mrf.mxu0
    %v1119 = vpop.f32.mrf.mxu0
    %1120 = vdwg.mxu0
    %1121 = vmatprep.subr.bf16.mxu0 0
    %1122 = vmatpush1.bf16.msra.mxu0 %v1056
    %1123 = vmatprep.subr.bf16.mxu0 0
    %1124 = vmatpush1.bf16.msra.mxu0 %v1055
    %1125 = vmatprep.subr.bf16.mxu0 0
    %1126 = vmatpush1.bf16.msra.mxu0 %v1054
    %1127 = vmatprep.subr.bf16.mxu0 0
    %1128 = vmatpush1.bf16.msra.mxu0 %v1053
    %1129 = vmatprep.subr.bf16.mxu0 0
    %1130 = vmatpush1.bf16.msra.mxu0 %v1052
    %1131 = vmatprep.subr.bf16.mxu0 0
    %1132 = vmatpush1.bf16.msra.mxu0 %v1051
    %1133 = vmatprep.subr.bf16.mxu0 0
    %1134 = vmatpush1.bf16.msra.mxu0 %v1050
    %1135 = vmatprep.subr.bf16.mxu0 0
    %1136 = vmatpush1.bf16.msra.mxu0 %v1049
    %1137 = vmatprep.subr.bf16.mxu0 0
    %1138 = vmatpush2.bf16.msra.mxu0 0
    %1139 = vmatprep.subr.bf16.mxu0 0
    %1140 = vmatpush2.bf16.msra.mxu0 0
    %1141 = vmatprep.subr.bf16.mxu0 0
    %1142 = vmatpush2.bf16.msra.mxu0 0
    %1143 = vmatprep.subr.bf16.mxu0 0
    %1144 = vmatpush2.bf16.msra.mxu0 0
    %1145 = vmatprep.subr.bf16.mxu0 0
    %1146 = vmatpush2.bf16.msra.mxu0 0
    %1147 = vmatprep.subr.bf16.mxu0 0
    %1148 = vmatpush2.bf16.msra.mxu0 0
    %1149 = vmatprep.subr.bf16.mxu0 0
    %1150 = vmatpush2.bf16.msra.mxu0 0
    %1151 = vmatprep.subr.bf16.mxu0 0
    %1152 = vmatpush2.bf16.msra.mxu0 0
    %1153 = vmatprep.mubr.bf16.mxu0 0
    %1154 = vmatmul.mubr.bf16.gmra.mxu0 %v881
    %v1155 = vpop.f32.mrf.mxu0
    %v1156 = vadd.f32 %v1116, %v1155
    %v1157 = vpop.f32.mrf.mxu0
    %v1158 = vpop.f32.mrf.mxu0
    %v1159 = vpop.f32.mrf.mxu0
    %1160 = vdwg.mxu0
    %1161 = vst [vmem:[%s5] sm:$0xff] %v1156
    // Predicated region
    $region30: #{cnn_model_forward.1} parent=1 // pred_check
      _
    $region31: #{cnn_model_forward.1} parent=1 // pred_check_branch
      %1163 = sbr.rel (0) target = $region33
    $region32: #{cnn_model_forward.1} parent=1 // pred_region
      _
    $region33: #{cnn_model_forward.1} parent=1 // pred_fallthru
      _
    // Predicated region
    $region34: #{cnn_model_forward.1} parent=1 // pred_check
      _
    $region35: #{cnn_model_forward.1} parent=1 // pred_check_branch
      %1165 = sbr.rel (0) target = $region37
    $region36: #{cnn_model_forward.1} parent=1 // pred_region
      _
    $region37: #{cnn_model_forward.1} parent=1 // pred_fallthru
      _
    %1166 = vsyncpa [#allocation3], 1
    %1167 = vsyncpa [#allocation5], 1

</llo_original>
